<compile_context>
chip_gen: v5e
topology: v5e:2x2
jax: 0.10.0
libtpu: 0.0.40
codegen_flags: <defaults>
</compile_context>

<pallas_src>
import functools

import jax
import jax.numpy as jnp
from jax.experimental import pallas as pl
from jax.experimental.pallas import tpu as pltpu


# ----------------------------------------------------------------------------
# Fused Pallas kernel: one grid step == (batch element, q tile).
# ----------------------------------------------------------------------------
def _rel_cross_mha_kernel(w_ref, r_ref, wq_ref, wkv_ref, wo_ref, g_ref, b_ref,
                          o_ref, kv_ref, *, n_head, d_head, pre_lnorm):
    dt = w_ref.dtype
    hd = n_head * d_head

    gamma = g_ref[...].astype(jnp.float32)      # [1, d_model]
    beta = b_ref[...].astype(jnp.float32)

    def layer_norm_f32(x):
        # one-pass stats: var = E[x^2] - E[x]^2 (one lane reduction less per call)
        mu = jnp.mean(x, axis=-1, keepdims=True)
        var = jnp.mean(x * x, axis=-1, keepdims=True) - mu * mu
        return (x - mu) * jax.lax.rsqrt(var + 1e-5) * gamma + beta

    # --- k/v projection: once per batch element (q-tile axis is the inner,
    # sequential grid axis).  One fused MXU call over the [d_model, 2*hd]
    # kv_net weight; result cached in VMEM scratch across q tiles.
    @pl.when(pl.program_id(1) == 0)
    def _():
        kv_ref[...] = jnp.dot(r_ref[0], wkv_ref[...],
                              preferred_element_type=jnp.float32).astype(dt)

    w2d = w_ref[0]                               # [tq, d_model] residual stream
    q_in = layer_norm_f32(w2d.astype(jnp.float32)).astype(dt) if pre_lnorm else w2d

    # q projection (scale already folded into wq by the wrapper), f32 accum.
    q = jnp.dot(q_in, wq_ref[...],
                preferred_element_type=jnp.float32).astype(dt)   # [tq, hd]

    kv = kv_ref[...]                             # [klen, 2*hd]

    # Head-major stacking (leading-axis stack). The MXU work below is
    # head-BATCHED: one dot_general per stage instead of n_head tiny ones.
    qh = jnp.stack([q[:, h * d_head:(h + 1) * d_head]
                    for h in range(n_head)], axis=0)             # [H, tq, D]
    kh = jnp.stack([kv[:, h * d_head:(h + 1) * d_head]
                    for h in range(n_head)], axis=0)             # [H, klen, D]
    vh = jnp.stack([kv[:, hd + h * d_head:hd + (h + 1) * d_head]
                    for h in range(n_head)], axis=0)             # [H, klen, D]

    # scores: batched "hqd,hkd->hqk"
    s = jax.lax.dot_general(qh, kh, (((2,), (2,)), ((0,), (0,))),
                            preferred_element_type=jnp.float32)  # [H, tq, klen]
    m = jnp.max(s, axis=-1, keepdims=True)
    p = jnp.exp(s - m)
    l = jnp.sum(p, axis=-1, keepdims=True)                       # [H, tq, 1]

    # weighted values: batched "hqk,hkd->hqd"
    o3 = jax.lax.dot_general(p.astype(dt), vh, (((2,), (1,)), ((0,), (0,))),
                             preferred_element_type=jnp.float32)  # [H, tq, D]
    # normalize the small output tile; exact reciprocal (f32-accurate).
    o3 = o3 * pl.reciprocal(l, approx=False)

    # lane-dense [tq, H*D] slab for the single o_net matmul (only the small
    # normalized result is assembled; no per-head intermediates kept live).
    attn_vec = jnp.concatenate([o3[h] for h in range(n_head)],
                               axis=-1).astype(dt)                # [tq, hd]

    attn_out = jnp.dot(attn_vec, wo_ref[...],
                       preferred_element_type=jnp.float32)        # [tq, d_model]

    resid = w2d.astype(jnp.float32) + attn_out
    out = resid if pre_lnorm else layer_norm_f32(resid)
    o_ref[0] = out.astype(o_ref.dtype)


def _pick_q_tile(qlen, target=256):
    """Largest divisor of qlen that is <= target and sublane-friendly."""
    if qlen <= target:
        return qlen
    for t in range(min(target, qlen), 0, -1):
        if qlen % t == 0 and t % 8 == 0:
            return t
    return qlen


def rel_cross_mha_fused(wb, rb, w_q_scaled, w_kv, w_o, gamma, beta, *,
                        n_head, d_head, pre_lnorm, q_tile=256):
    """wb: [bsz, qlen, d_model], rb: [bsz, klen, d_model] -> [bsz, qlen, d_model]."""
    bsz, qlen, d_model = wb.shape
    _, klen, _ = rb.shape
    hd = n_head * d_head
    tq = _pick_q_tile(qlen, q_tile)
    n_qt = qlen // tq

    g2 = gamma.reshape(1, d_model)
    b2 = beta.reshape(1, d_model)

    # VMEM budget ~ actual working set (double-buffered blocks + scratch +
    # transient f32 score/prob tiles), clamped to sane bounds.
    isz = jnp.dtype(wb.dtype).itemsize
    weights_b = (d_model * hd + d_model * 2 * hd + hd * d_model + 2 * d_model) * isz * 2
    acts_b = (2 * tq * d_model + klen * d_model) * isz * 2
    kv_b = klen * 2 * hd * isz
    score_b = 3 * n_head * tq * klen * 4
    vmem_limit = int(min(max(weights_b + acts_b + kv_b + score_b + (8 << 20),
                             32 << 20), 100 << 20))

    kernel = functools.partial(_rel_cross_mha_kernel, n_head=n_head,
                               d_head=d_head, pre_lnorm=pre_lnorm)
    return pl.pallas_call(
        kernel,
        out_shape=jax.ShapeDtypeStruct((bsz, qlen, d_model), wb.dtype),
        grid=(bsz, n_qt),
        in_specs=[
            pl.BlockSpec((1, tq, d_model), lambda b, qi: (b, qi, 0)),   # w tile
            pl.BlockSpec((1, klen, d_model), lambda b, qi: (b, 0, 0)),  # r (per batch)
            pl.BlockSpec((d_model, hd), lambda b, qi: (0, 0)),          # W_q (scaled)
            pl.BlockSpec((d_model, 2 * hd), lambda b, qi: (0, 0)),      # W_kv (fused)
            pl.BlockSpec((hd, d_model), lambda b, qi: (0, 0)),          # W_o
            pl.BlockSpec((1, d_model), lambda b, qi: (0, 0)),           # ln gamma
            pl.BlockSpec((1, d_model), lambda b, qi: (0, 0)),           # ln beta
        ],
        out_specs=pl.BlockSpec((1, tq, d_model), lambda b, qi: (b, qi, 0)),
        scratch_shapes=[pltpu.VMEM((klen, 2 * hd), wb.dtype)],          # cached k|v
        compiler_params=pltpu.CompilerParams(
            dimension_semantics=("parallel", "arbitrary"),
            vmem_limit_bytes=vmem_limit),
    )(wb, rb, w_q_scaled, w_kv, w_o, g2, b2)


# ----------------------------------------------------------------------------
# Module wrapper (parameter setup + minimal layout glue in plain JAX)
# ----------------------------------------------------------------------------
class RelCrossMultiHeadAttnPallas:
    def __init__(self, n_head, d_model, d_head, dropout, dropatt=0,
                 tgt_len=None, ext_len=None, mem_len=None, pre_lnorm=False,
                 key=jax.random.PRNGKey(42), dtype=jnp.float32):
        self.n_head = n_head
        self.d_model = d_model
        self.d_head = d_head
        self.scale = 1.0 / (d_head ** 0.5)
        self.pre_lnorm = pre_lnorm
        # dropout / dropatt: identity in eval mode.
        # NOTE: for v6e/v7x production use dtype=jnp.bfloat16 (MXU operands
        # stay in the input dtype; accumulation/softmax/LN stay f32 in-kernel).

        kq, kkv, ko = jax.random.split(key, 3)
        std = 0.02
        hd = n_head * d_head
        # stored as [in_features, out_features] so that y = x @ W
        self.w_q = (std * jax.random.normal(kq, (d_model, hd))).astype(dtype)
        self.w_kv = (std * jax.random.normal(kkv, (d_model, 2 * hd))).astype(dtype)
        self.w_o = (std * jax.random.normal(ko, (hd, d_model))).astype(dtype)
        self.ln_gamma = jnp.ones((d_model,), dtype)
        self.ln_beta = jnp.zeros((d_model,), dtype)
        # scale folded into the (tiny) q-projection weight once at init.
        self.w_q_scaled = (self.w_q.astype(jnp.float32) * self.scale).astype(dtype)

    def __call__(self, w, r, attn_mask=None, mems=None):
        # layout: w [qlen, bsz, d_model], r [klen, bsz, d_model]
        if attn_mask is not None:
            raise NotImplementedError("attn_mask is not supported by this kernel")
        if mems is not None:
            raise NotImplementedError("mems are not supported by this kernel")
        wb = jnp.transpose(w, (1, 0, 2))   # [bsz, qlen, d_model]
        rb = jnp.transpose(r, (1, 0, 2))   # [bsz, klen, d_model]
        ob = rel_cross_mha_fused(
            wb, rb, self.w_q_scaled, self.w_kv, self.w_o,
            self.ln_gamma, self.ln_beta,
            n_head=self.n_head, d_head=self.d_head, pre_lnorm=self.pre_lnorm)
        return jnp.transpose(ob, (1, 0, 2))  # back to [qlen, bsz, d_model]


# ----------------------------------------------------------------------------
def _reference(w, r, mod):
    """Pure-JAX reference of the same forward (for correctness check)."""
    qlen, bsz, d_model = w.shape
    klen = r.shape[0]
    H, D = mod.n_head, mod.d_head
    hd = H * D
    w2d = w.reshape(qlen * bsz, d_model)
    r2d = r.reshape(klen * bsz, d_model)

    def ln(x):
        mu = x.mean(-1, keepdims=True)
        var = ((x - mu) ** 2).mean(-1, keepdims=True)
        return (x - mu) / jnp.sqrt(var + 1e-5) * mod.ln_gamma + mod.ln_beta

    q_in = ln(w2d) if mod.pre_lnorm else w2d
    q = (q_in @ mod.w_q).reshape(qlen, bsz, H, D)
    kv = r2d @ mod.w_kv
    k = kv[:, :hd].reshape(klen, bsz, H, D)
    v = kv[:, hd:].reshape(klen, bsz, H, D)
    s = jnp.einsum('qbhd,kbhd->qkbh', q, k) * mod.scale
    p = jax.nn.softmax(s, axis=1)
    av = jnp.einsum('qkbh,kbhd->qbhd', p, v).reshape(qlen * bsz, hd)
    out = w2d + av @ mod.w_o
    out = out if mod.pre_lnorm else ln(out)
    return out.reshape(qlen, bsz, d_model)


if __name__ == "__main__":
    n_head, d_model, d_head = 4, 32, 8
    qlen, klen, bsz = 8, 8, 2

    key = jax.random.PRNGKey(0)
    kparam, kw, kr = jax.random.split(key, 3)
    w = jax.random.normal(kw, (qlen, bsz, d_model), jnp.float32)
    r = jax.random.normal(kr, (klen, bsz, d_model), jnp.float32)

    for pre_lnorm in (False, True):
        module = RelCrossMultiHeadAttnPallas(
            n_head=n_head, d_model=d_model, d_head=d_head, dropout=0.0,
            pre_lnorm=pre_lnorm, key=kparam)
        out = jax.block_until_ready(module(w, r))
        assert out.shape == (qlen, bsz, d_model)
        assert bool(jnp.all(jnp.isfinite(out)))
        ref = _reference(w, r, module)
        max_err = float(jnp.max(jnp.abs(out - ref)))
        assert max_err < 1e-2, (
            f"pre_lnorm={pre_lnorm}: mismatch vs reference, max abs err {max_err}")

    print("KERNEL_OK")
</pallas_src>

<mosaic_0001>
module attributes {stable_mosaic.version = 11 : i64} {
  func.func @_rel_cross_mha_kernel(%arg0: i32, %arg1: i32, %arg2: memref<1x8x32xf32, #tpu.memory_space<vmem>>, %arg3: memref<1x8x32xf32, #tpu.memory_space<vmem>>, %arg4: memref<32x32xf32, #tpu.memory_space<vmem>>, %arg5: memref<32x64xf32, #tpu.memory_space<vmem>>, %arg6: memref<32x32xf32, #tpu.memory_space<vmem>>, %arg7: memref<1x32xf32, #tpu.memory_space<vmem>>, %arg8: memref<1x32xf32, #tpu.memory_space<vmem>>, %arg9: memref<1x8x32xf32, #tpu.memory_space<vmem>>, %arg10: memref<8x64xf32, #tpu.memory_space<vmem>>) attributes {dimension_semantics = [#tpu.dimension_semantics<parallel>, #tpu.dimension_semantics<arbitrary>], iteration_bounds = array<i64: 2, 1>, scalar_prefetch = 0 : i64, scratch_operands = 1 : i64, tpu.core_type = #tpu.core_type<tc>, window_params = [{transform_indices = @transform_0, window_bounds = array<i64: 1, 8, 32>}, {transform_indices = @transform_1, window_bounds = array<i64: 1, 8, 32>}, {pipeline_mode = #tpu.pipeline_mode<synchronous>, transform_indices = @transform_2, window_bounds = array<i64: 32, 32>}, {pipeline_mode = #tpu.pipeline_mode<synchronous>, transform_indices = @transform_3, window_bounds = array<i64: 32, 64>}, {pipeline_mode = #tpu.pipeline_mode<synchronous>, transform_indices = @transform_4, window_bounds = array<i64: 32, 32>}, {pipeline_mode = #tpu.pipeline_mode<synchronous>, transform_indices = @transform_5, window_bounds = array<i64: 1, 32>}, {pipeline_mode = #tpu.pipeline_mode<synchronous>, transform_indices = @transform_6, window_bounds = array<i64: 1, 32>}, {transform_indices = @transform_7, window_bounds = array<i64: 1, 8, 32>}]} {
    %c0 = arith.constant 0 : index
    %c0_0 = arith.constant 0 : index
    %0 = vector.load %arg7[%c0, %c0_0] : memref<1x32xf32, #tpu.memory_space<vmem>>, vector<1x32xf32>
    %c0_1 = arith.constant 0 : index
    %c0_2 = arith.constant 0 : index
    %1 = vector.load %arg8[%c0_1, %c0_2] : memref<1x32xf32, #tpu.memory_space<vmem>>, vector<1x32xf32>
    %c0_i32 = arith.constant 0 : i32
    %2 = arith.cmpi eq, %arg1, %c0_i32 : i32
    %3 = arith.extui %2 : i1 to i32
    %c0_i32_3 = arith.constant 0 : i32
    %4 = arith.cmpi ne, %3, %c0_i32_3 : i32
    scf.if %4 {
      %c0_26 = arith.constant 0 : index
      %c0_27 = arith.constant 0 : index
      %c0_28 = arith.constant 0 : index
      %86 = vector.load %arg3[%c0_26, %c0_27, %c0_28] : memref<1x8x32xf32, #tpu.memory_space<vmem>>, vector<1x8x32xf32>
      %87 = vector.shape_cast %86 : vector<1x8x32xf32> to vector<8x32xf32>
      %c0_29 = arith.constant 0 : index
      %c0_30 = arith.constant 0 : index
      %88 = vector.load %arg5[%c0_29, %c0_30] : memref<32x64xf32, #tpu.memory_space<vmem>>, vector<32x64xf32>
      %cst_31 = arith.constant dense<0.000000e+00> : vector<8x64xf32>
      %89 = tpu.matmul %87, %88, %cst_31 {dimension_numbers = #tpu.dot_dimension_numbers<[1], [0], [0], [1], [0, 0, 1, 1], [], []>} : vector<8x32xf32>, vector<32x64xf32>, vector<8x64xf32> -> vector<8x64xf32>
      %c0_32 = arith.constant 0 : index
      %c0_33 = arith.constant 0 : index
      %90 = vector.load %arg10[%c0_32, %c0_33] : memref<8x64xf32, #tpu.memory_space<vmem>>, vector<8x64xf32>
      tpu.vector_store %arg10[%c0_32, %c0_33], %89 {strides = array<i32>} : memref<8x64xf32, #tpu.memory_space<vmem>>, vector<8x64xf32>,
    } else {
    }
    %c0_4 = arith.constant 0 : index
    %c0_5 = arith.constant 0 : index
    %c0_6 = arith.constant 0 : index
    %5 = vector.load %arg2[%c0_4, %c0_5, %c0_6] : memref<1x8x32xf32, #tpu.memory_space<vmem>>, vector<1x8x32xf32>
    %6 = vector.shape_cast %5 : vector<1x8x32xf32> to vector<8x32xf32>
    %c0_7 = arith.constant 0 : index
    %c0_8 = arith.constant 0 : index
    %7 = vector.load %arg4[%c0_7, %c0_8] : memref<32x32xf32, #tpu.memory_space<vmem>>, vector<32x32xf32>
    %cst = arith.constant dense<0.000000e+00> : vector<8x32xf32>
    %8 = tpu.matmul %6, %7, %cst {dimension_numbers = #tpu.dot_dimension_numbers<[1], [0], [0], [1], [0, 0, 1, 1], [], []>} : vector<8x32xf32>, vector<32x32xf32>, vector<8x32xf32> -> vector<8x32xf32>
    %c0_9 = arith.constant 0 : index
    %c0_10 = arith.constant 0 : index
    %9 = vector.load %arg10[%c0_9, %c0_10] : memref<8x64xf32, #tpu.memory_space<vmem>>, vector<8x64xf32>
    %10 = vector.extract_strided_slice %8 {offsets = [0, 0], sizes = [8, 8], strides = [1, 1]} : vector<8x32xf32> to vector<8x8xf32>
    %11 = vector.extract_strided_slice %8 {offsets = [0, 8], sizes = [8, 8], strides = [1, 1]} : vector<8x32xf32> to vector<8x8xf32>
    %12 = vector.extract_strided_slice %8 {offsets = [0, 16], sizes = [8, 8], strides = [1, 1]} : vector<8x32xf32> to vector<8x8xf32>
    %13 = vector.extract_strided_slice %8 {offsets = [0, 24], sizes = [8, 8], strides = [1, 1]} : vector<8x32xf32> to vector<8x8xf32>
    %14 = vector.shape_cast %10 : vector<8x8xf32> to vector<1x8x8xf32>
    %15 = vector.shape_cast %11 : vector<8x8xf32> to vector<1x8x8xf32>
    %16 = vector.shape_cast %12 : vector<8x8xf32> to vector<1x8x8xf32>
    %17 = vector.shape_cast %13 : vector<8x8xf32> to vector<1x8x8xf32>
    %18 = tpu.concatenate %14, %15, %16, %17 in 0 : vector<1x8x8xf32>, vector<1x8x8xf32>, vector<1x8x8xf32>, vector<1x8x8xf32> -> vector<4x8x8xf32>
    %19 = vector.extract_strided_slice %9 {offsets = [0, 0], sizes = [8, 8], strides = [1, 1]} : vector<8x64xf32> to vector<8x8xf32>
    %20 = vector.extract_strided_slice %9 {offsets = [0, 8], sizes = [8, 8], strides = [1, 1]} : vector<8x64xf32> to vector<8x8xf32>
    %21 = vector.extract_strided_slice %9 {offsets = [0, 16], sizes = [8, 8], strides = [1, 1]} : vector<8x64xf32> to vector<8x8xf32>
    %22 = vector.extract_strided_slice %9 {offsets = [0, 24], sizes = [8, 8], strides = [1, 1]} : vector<8x64xf32> to vector<8x8xf32>
    %23 = vector.shape_cast %19 : vector<8x8xf32> to vector<1x8x8xf32>
    %24 = vector.shape_cast %20 : vector<8x8xf32> to vector<1x8x8xf32>
    %25 = vector.shape_cast %21 : vector<8x8xf32> to vector<1x8x8xf32>
    %26 = vector.shape_cast %22 : vector<8x8xf32> to vector<1x8x8xf32>
    %27 = tpu.concatenate %23, %24, %25, %26 in 0 : vector<1x8x8xf32>, vector<1x8x8xf32>, vector<1x8x8xf32>, vector<1x8x8xf32> -> vector<4x8x8xf32>
    %28 = vector.extract_strided_slice %9 {offsets = [0, 32], sizes = [8, 8], strides = [1, 1]} : vector<8x64xf32> to vector<8x8xf32>
    %29 = vector.extract_strided_slice %9 {offsets = [0, 40], sizes = [8, 8], strides = [1, 1]} : vector<8x64xf32> to vector<8x8xf32>
    %30 = vector.extract_strided_slice %9 {offsets = [0, 48], sizes = [8, 8], strides = [1, 1]} : vector<8x64xf32> to vector<8x8xf32>
    %31 = vector.extract_strided_slice %9 {offsets = [0, 56], sizes = [8, 8], strides = [1, 1]} : vector<8x64xf32> to vector<8x8xf32>
    %32 = vector.shape_cast %28 : vector<8x8xf32> to vector<1x8x8xf32>
    %33 = vector.shape_cast %29 : vector<8x8xf32> to vector<1x8x8xf32>
    %34 = vector.shape_cast %30 : vector<8x8xf32> to vector<1x8x8xf32>
    %35 = vector.shape_cast %31 : vector<8x8xf32> to vector<1x8x8xf32>
    %36 = tpu.concatenate %32, %33, %34, %35 in 0 : vector<1x8x8xf32>, vector<1x8x8xf32>, vector<1x8x8xf32>, vector<1x8x8xf32> -> vector<4x8x8xf32>
    %cst_11 = arith.constant dense<0.000000e+00> : vector<4x8x8xf32>
    %37 = tpu.matmul %18, %27, %cst_11 {dimension_numbers = #tpu.dot_dimension_numbers<[2], [2], [1], [1], [0, 0, 0, 1, 1, 1], [0], [0]>} : vector<4x8x8xf32>, vector<4x8x8xf32>, vector<4x8x8xf32> -> vector<4x8x8xf32>
    %cst_12 = arith.constant dense<0xFF800000> : vector<4x8xf32>
    %38 = vector.multi_reduction <maximumf>, %37, %cst_12 [2] : vector<4x8x8xf32> to vector<4x8xf32>
    %39 = vector.shape_cast %38 : vector<4x8xf32> to vector<4x8x1xf32>
    %40 = vector.broadcast %39 : vector<4x8x1xf32> to vector<4x8x8xf32>
    %41 = arith.subf %37, %40 : vector<4x8x8xf32>
    %42 = math.exp %41 : vector<4x8x8xf32>
    %cst_13 = arith.constant dense<0.000000e+00> : vector<4x8xf32>
    %43 = vector.multi_reduction <add>, %42, %cst_13 [2] : vector<4x8x8xf32> to vector<4x8xf32>
    %44 = vector.shape_cast %43 : vector<4x8xf32> to vector<4x8x1xf32>
    %cst_14 = arith.constant dense<0.000000e+00> : vector<4x8x8xf32>
    %45 = tpu.matmul %42, %36, %cst_14 {dimension_numbers = #tpu.dot_dimension_numbers<[2], [1], [1], [2], [0, 0, 0, 1, 1, 2], [0], [0]>} : vector<4x8x8xf32>, vector<4x8x8xf32>, vector<4x8x8xf32> -> vector<4x8x8xf32>
    %46 = tpu.reciprocal %44 : vector<4x8x1xf32> -> vector<4x8x1xf32>
    %47 = vector.broadcast %46 : vector<4x8x1xf32> to vector<4x8x8xf32>
    %48 = arith.mulf %45, %47 : vector<4x8x8xf32>
    %49 = vector.extract_strided_slice %48 {offsets = [0, 0, 0], sizes = [1, 8, 8], strides = [1, 1, 1]} : vector<4x8x8xf32> to vector<1x8x8xf32>
    %50 = vector.shape_cast %49 : vector<1x8x8xf32> to vector<8x8xf32>
    %51 = vector.extract_strided_slice %48 {offsets = [1, 0, 0], sizes = [1, 8, 8], strides = [1, 1, 1]} : vector<4x8x8xf32> to vector<1x8x8xf32>
    %52 = vector.shape_cast %51 : vector<1x8x8xf32> to vector<8x8xf32>
    %53 = vector.extract_strided_slice %48 {offsets = [2, 0, 0], sizes = [1, 8, 8], strides = [1, 1, 1]} : vector<4x8x8xf32> to vector<1x8x8xf32>
    %54 = vector.shape_cast %53 : vector<1x8x8xf32> to vector<8x8xf32>
    %55 = vector.extract_strided_slice %48 {offsets = [3, 0, 0], sizes = [1, 8, 8], strides = [1, 1, 1]} : vector<4x8x8xf32> to vector<1x8x8xf32>
    %56 = vector.shape_cast %55 : vector<1x8x8xf32> to vector<8x8xf32>
    %57 = tpu.concatenate %50, %52, %54, %56 in 1 : vector<8x8xf32>, vector<8x8xf32>, vector<8x8xf32>, vector<8x8xf32> -> vector<8x32xf32>
    %c0_15 = arith.constant 0 : index
    %c0_16 = arith.constant 0 : index
    %58 = vector.load %arg6[%c0_15, %c0_16] : memref<32x32xf32, #tpu.memory_space<vmem>>, vector<32x32xf32>
    %cst_17 = arith.constant dense<0.000000e+00> : vector<8x32xf32>
    %59 = tpu.matmul %57, %58, %cst_17 {dimension_numbers = #tpu.dot_dimension_numbers<[1], [0], [0], [1], [0, 0, 1, 1], [], []>} : vector<8x32xf32>, vector<32x32xf32>, vector<8x32xf32> -> vector<8x32xf32>
    %60 = arith.addf %6, %59 : vector<8x32xf32>
    %cst_18 = arith.constant dense<0.000000e+00> : vector<8xf32>
    %61 = vector.multi_reduction <add>, %60, %cst_18 [1] : vector<8x32xf32> to vector<8xf32>
    %62 = vector.shape_cast %61 : vector<8xf32> to vector<8x1xf32>
    %cst_19 = arith.constant 3.200000e+01 : f32
    %63 = vector.broadcast %cst_19 : f32 to vector<8x1xf32>
    %64 = arith.divf %62, %63 : vector<8x1xf32>
    %65 = arith.mulf %60, %60 : vector<8x32xf32>
    %cst_20 = arith.constant dense<0.000000e+00> : vector<8xf32>
    %66 = vector.multi_reduction <add>, %65, %cst_20 [1] : vector<8x32xf32> to vector<8xf32>
    %67 = vector.shape_cast %66 : vector<8xf32> to vector<8x1xf32>
    %cst_21 = arith.constant 3.200000e+01 : f32
    %68 = vector.broadcast %cst_21 : f32 to vector<8x1xf32>
    %69 = arith.divf %67, %68 : vector<8x1xf32>
    %70 = arith.mulf %64, %64 : vector<8x1xf32>
    %71 = arith.subf %69, %70 : vector<8x1xf32>
    %72 = vector.broadcast %64 : vector<8x1xf32> to vector<8x32xf32>
    %73 = arith.subf %60, %72 : vector<8x32xf32>
    %cst_22 = arith.constant 9.99999974E-6 : f32
    %74 = vector.broadcast %cst_22 : f32 to vector<8x1xf32>
    %75 = arith.addf %71, %74 : vector<8x1xf32>
    %76 = math.rsqrt %75 : vector<8x1xf32>
    %77 = vector.broadcast %76 : vector<8x1xf32> to vector<8x32xf32>
    %78 = arith.mulf %73, %77 : vector<8x32xf32>
    %79 = vector.broadcast %0 : vector<1x32xf32> to vector<8x32xf32>
    %80 = arith.mulf %78, %79 : vector<8x32xf32>
    %81 = vector.broadcast %1 : vector<1x32xf32> to vector<8x32xf32>
    %82 = arith.addf %80, %81 : vector<8x32xf32>
    %c0_23 = arith.constant 0 : index
    %c0_24 = arith.constant 0 : index
    %c0_25 = arith.constant 0 : index
    %83 = vector.load %arg9[%c0_23, %c0_24, %c0_25] : memref<1x8x32xf32, #tpu.memory_space<vmem>>, vector<1x8x32xf32>
    %84 = vector.shape_cast %83 : vector<1x8x32xf32> to vector<8x32xf32>
    %85 = vector.shape_cast %82 : vector<8x32xf32> to vector<1x8x32xf32>
    tpu.vector_store %arg9[%c0_23, %c0_24, %c0_25], %85 {strides = array<i32>} : memref<1x8x32xf32, #tpu.memory_space<vmem>>, vector<1x8x32xf32>,
    return
  }
  func.func @transform_0(%arg0: i32, %arg1: i32) -> (i32, i32, i32) {
    %c0_i32 = arith.constant 0 : i32
    %c0_i32_0 = arith.constant 0 : i32
    return %arg0, %arg1, %c0_i32 : i32, i32, i32
  }
  func.func @transform_1(%arg0: i32, %arg1: i32) -> (i32, i32, i32) {
    %c0_i32 = arith.constant 0 : i32
    %c0_i32_0 = arith.constant 0 : i32
    %c0_i32_1 = arith.constant 0 : i32
    return %arg0, %c0_i32, %c0_i32_0 : i32, i32, i32
  }
  func.func @transform_2(%arg0: i32, %arg1: i32) -> (i32, i32) {
    %c0_i32 = arith.constant 0 : i32
    %c0_i32_0 = arith.constant 0 : i32
    %c0_i32_1 = arith.constant 0 : i32
    return %c0_i32, %c0_i32_0 : i32, i32
  }
  func.func @transform_3(%arg0: i32, %arg1: i32) -> (i32, i32) {
    %c0_i32 = arith.constant 0 : i32
    %c0_i32_0 = arith.constant 0 : i32
    %c0_i32_1 = arith.constant 0 : i32
    return %c0_i32, %c0_i32_0 : i32, i32
  }
  func.func @transform_4(%arg0: i32, %arg1: i32) -> (i32, i32) {
    %c0_i32 = arith.constant 0 : i32
    %c0_i32_0 = arith.constant 0 : i32
    %c0_i32_1 = arith.constant 0 : i32
    return %c0_i32, %c0_i32_0 : i32, i32
  }
  func.func @transform_5(%arg0: i32, %arg1: i32) -> (i32, i32) {
    %c0_i32 = arith.constant 0 : i32
    %c0_i32_0 = arith.constant 0 : i32
    %c0_i32_1 = arith.constant 0 : i32
    return %c0_i32, %c0_i32_0 : i32, i32
  }
  func.func @transform_6(%arg0: i32, %arg1: i32) -> (i32, i32) {
    %c0_i32 = arith.constant 0 : i32
    %c0_i32_0 = arith.constant 0 : i32
    %c0_i32_1 = arith.constant 0 : i32
    return %c0_i32, %c0_i32_0 : i32, i32
  }
  func.func @transform_7(%arg0: i32, %arg1: i32) -> (i32, i32, i32) {
    %c0_i32 = arith.constant 0 : i32
    %c0_i32_0 = arith.constant 0 : i32
    return %arg0, %arg1, %c0_i32 : i32, i32, i32
  }
}

</mosaic_0001>

<llo_original>
// kernel: tpu_custom_call.1
$region0: #{tpu_custom_call.1}
  #allocation0 [shape = 'u32[]', space=smem, size = 0x4, offset = 0x4, fixed_abs, tag = 'smem constant byte address 0x4 - core index']
  #allocation1 [shape = 'u32[72,128]{1,0:T(1,128)}', space=vmem, size = 0x9000, scoped, tag = 'internal scratch']
  #allocation2 [shape = 'f32[8,64]{1,0:T(8,128)}', space=vmem, size = 0x1000, scoped, tag = 'scratch operand']
  %s0 = inlined_call_operand.hbm [shape: f32[2,8,32], index: 0, kind: input, shape index: {}]
  %s1 = inlined_call_operand.hbm [shape: f32[2,8,32], index: 1, kind: input, shape index: {}]
  %s2 = inlined_call_operand.hbm [shape: f32[32,32], index: 2, kind: input, shape index: {}]
  %s3 = inlined_call_operand.hbm [shape: f32[32,64], index: 3, kind: input, shape index: {}]
  %s4 = inlined_call_operand.hbm [shape: f32[32,32], index: 4, kind: input, shape index: {}]
  %s5 = inlined_call_operand.vmem [shape: f32[1,32], index: 5, kind: input, shape index: {}]
  %s6 = inlined_call_operand.vmem [shape: f32[1,32], index: 6, kind: input, shape index: {}]
  %s7 = inlined_call_operand.hbm [shape: f32[2,8,32], index: 7, kind: output, shape index: {}]
  %s8 = sld [smem:[#allocation0]]
  $region85: #{tpu_custom_call.1} parent=0
    _
  %s10 = ssub.s32 1, %s8
  %s11 = scalar_select 0, %s10, %s8
  $region1: #{tpu_custom_call.1} parent=0
    #allocation3 [shape = 'u8[8192]{0}', space=vmem, size = 0x2000, scoped, tag = 'input window, operand 0']
    #allocation4 [shape = 's32[2]{0}', space=sflag, size = 0x8, scoped, tag = 'scoped memory for tpu_custom_call.1']
    #allocation5 [shape = 's32[2]{0}', space=sflag, size = 0x8, scoped, tag = 'scoped memory for tpu_custom_call.1']
    #allocation6 [shape = 'u8[8192]{0}', space=vmem, size = 0x2000, scoped, tag = 'input window, operand 1']
    #allocation7 [shape = 's32[2]{0}', space=sflag, size = 0x8, scoped, tag = 'scoped memory for tpu_custom_call.1']
    #allocation8 [shape = 'u8[16384]{0}', space=vmem, size = 0x4000, scoped, tag = 'input window, operand 2, single buffered']
    #allocation9 [shape = 'u8[16384]{0}', space=vmem, size = 0x4000, scoped, tag = 'input window, operand 3, single buffered']
    #allocation10 [shape = 's32[1]{0}', space=sflag, size = 0x4, scoped, tag = 'scoped memory for tpu_custom_call.1']
    #allocation11 [shape = 'u8[16384]{0}', space=vmem, size = 0x4000, scoped, tag = 'input window, operand 4, single buffered']
    #allocation12 [shape = 'u8[8192]{0}', space=vmem, size = 0x2000, scoped, tag = 'output window, operand 0']
    %12 = vsyncpa [#allocation4], 0
    %s13 = scalar_lea.sflag [#allocation4], 1
    %14 = vsyncpa %s13, 0
    %15 = vsyncpa [#allocation7], 0
    %s16 = scalar_lea.sflag [#allocation7], 1
    %17 = vsyncpa %s16, 0
    %18 = vsyncpa [#allocation10], 0
    %19 = vsyncpa [#allocation5], 0
    %s20 = scalar_lea.sflag [#allocation5], 1
    %21 = vsyncpa %s20, 0
    loop: start=0, step=1, limit=4
    $region2: #{tpu_custom_call.1} parent=1 // loop_pre_header
      _
    $region3: #{tpu_custom_call.1} parent=1 // loop_header
      %s23 = sphi 0, %s27
      %p24 = scmp.ge.s32.totalorder %s23, 4
      %s30 = sphi 0, %s42
      %s31 = sphi 0, %s38
      %s32 = sphi 0, %s30
      %s33 = sphi 0, %s31
      %s34 = sphi 0, %s32
      %s35 = sphi 0, %s33
      %s47 = sphi 0, %s49
      %s50 = sphi 0, %s47
      %s51 = sphi 0, %s50
      %s67 = sphi 0, %s51
      %s73 = sphi 0, %s75
      %s76 = sphi 0, %s73
      %s77 = sphi 0, %s76
      %s93 = sphi 0, %s77
      %s97 = sphi 0, %s97
      %s99 = sphi 0, %s97
      %s100 = sphi 0, %s99
      %s114 = sphi 0, %s100
      %s118 = sphi 0, %s118
      %s120 = sphi 0, %s118
      %s121 = sphi 0, %s120
      %s135 = sphi 0, %s121
      %s139 = sphi 0, %s139
      %s141 = sphi 0, %s139
      %s142 = sphi 0, %s141
      %s156 = sphi 0, %s142
      %s160 = sphi 0, %s160
      %s162 = sphi 0, %s160
      %s163 = sphi 0, %s162
      %s177 = sphi 0, %s163
      %s181 = sphi 0, %s181
      %s183 = sphi 0, %s181
      %s184 = sphi 0, %s183
      %s198 = sphi 0, %s184
      %s206 = sphi 0, %s208
      %s209 = sphi 0, %s206
      %s210 = sphi 0, %s209
      %s226 = sphi 0, %s210
    $region4: #{tpu_custom_call.1} parent=1 // loop_header_branch
      %26 = sbr.rel (%p24) target = $region8
    $region5: #{tpu_custom_call.1} parent=1 // loop_body
      %s28 = ssub.s32 %s23, 1
      %s29 = ssub.s32 %s23, 2
      %s36 = sadd.s32 1, %s31
      %p37 = scmp.ge.s32.totalorder %s36, 1
      %s38 = scalar_select %p37, 0, %s36
      %s39 = sadd.s32 1, %s30
      %s40 = scalar_select %p37, %s39, %s30
      %p41 = scmp.ge.s32.totalorder %s40, 2
      %s42 = scalar_select %p41, 0, %s40
      %s43 = ssub.s32 %s30, %s42
      %s44 = ssub.s32 %s31, %s38
      %s45 = sor.u32 %s43, %s44
      %p46 = scmp.eq.s32.totalorder %s45, 0
      %s48 = sadd.s32 %s47, 1
      %s49 = scalar_select %p46, %s47, %s48
      %p52 = pneg %p46
      %p53 = scmp.eq.s32.totalorder %s23, 1
      %p54 = por %p52, %p53
      %p55 = scmp.ne.s32.totalorder %s47, %s50
      %p56 = scmp.eq.s32.totalorder %s23, 0
      %p57 = por %p55, %p56
      %p58 = scmp.ne.s32.totalorder %s47, %s50
      %p59 = scmp.eq.s32.totalorder %s28, 1
      %p60 = por %p58, %p59
      %p61 = scmp.ne.s32.totalorder %s50, %s51
      %p62 = scmp.eq.s32.totalorder %s28, 0
      %p63 = por %p61, %p62
      %p64 = scmp.ne.s32.totalorder %s50, %s51
      %p65 = scmp.eq.s32.totalorder %s29, 1
      %p66 = por %p64, %p65
      %p68 = scmp.ne.s32.totalorder %s51, %s67
      %p69 = scmp.eq.s32.totalorder %s29, 0
      %p70 = por %p68, %p69
      %s71 = ssub.s32 %s30, %s42
      %p72 = scmp.eq.s32.totalorder %s71, 0
      %s74 = sadd.s32 %s73, 1
      %s75 = scalar_select %p72, %s73, %s74
      %p78 = pneg %p72
      %p79 = scmp.eq.s32.totalorder %s23, 1
      %p80 = por %p78, %p79
      %p81 = scmp.ne.s32.totalorder %s73, %s76
      %p82 = scmp.eq.s32.totalorder %s23, 0
      %p83 = por %p81, %p82
      %p84 = scmp.ne.s32.totalorder %s73, %s76
      %p85 = scmp.eq.s32.totalorder %s28, 1
      %p86 = por %p84, %p85
      %p87 = scmp.ne.s32.totalorder %s76, %s77
      %p88 = scmp.eq.s32.totalorder %s28, 0
      %p89 = por %p87, %p88
      %p90 = scmp.ne.s32.totalorder %s76, %s77
      %p91 = scmp.eq.s32.totalorder %s29, 1
      %p92 = por %p90, %p91
      %p94 = scmp.ne.s32.totalorder %s77, %s93
      %p95 = scmp.eq.s32.totalorder %s29, 0
      %p96 = por %p94, %p95
      %s98 = sadd.s32 %s97, 1
      %p101 = scmp.eq.s32.totalorder %s23, 1
      %p102 = scmp.ne.s32.totalorder %s97, %s99
      %p103 = scmp.eq.s32.totalorder %s23, 0
      %p104 = por %p102, %p103
      %p105 = scmp.ne.s32.totalorder %s97, %s99
      %p106 = scmp.eq.s32.totalorder %s28, 1
      %p107 = por %p105, %p106
      %p108 = scmp.ne.s32.totalorder %s99, %s100
      %p109 = scmp.eq.s32.totalorder %s28, 0
      %p110 = por %p108, %p109
      %p111 = scmp.ne.s32.totalorder %s99, %s100
      %p112 = scmp.eq.s32.totalorder %s29, 1
      %p113 = por %p111, %p112
      %p115 = scmp.ne.s32.totalorder %s100, %s114
      %p116 = scmp.eq.s32.totalorder %s29, 0
      %p117 = por %p115, %p116
      %s119 = sadd.s32 %s118, 1
      %p122 = scmp.eq.s32.totalorder %s23, 1
      %p123 = scmp.ne.s32.totalorder %s118, %s120
      %p124 = scmp.eq.s32.totalorder %s23, 0
      %p125 = por %p123, %p124
      %p126 = scmp.ne.s32.totalorder %s118, %s120
      %p127 = scmp.eq.s32.totalorder %s28, 1
      %p128 = por %p126, %p127
      %p129 = scmp.ne.s32.totalorder %s120, %s121
      %p130 = scmp.eq.s32.totalorder %s28, 0
      %p131 = por %p129, %p130
      %p132 = scmp.ne.s32.totalorder %s120, %s121
      %p133 = scmp.eq.s32.totalorder %s29, 1
      %p134 = por %p132, %p133
      %p136 = scmp.ne.s32.totalorder %s121, %s135
      %p137 = scmp.eq.s32.totalorder %s29, 0
      %p138 = por %p136, %p137
      %s140 = sadd.s32 %s139, 1
      %p143 = scmp.eq.s32.totalorder %s23, 1
      %p144 = scmp.ne.s32.totalorder %s139, %s141
      %p145 = scmp.eq.s32.totalorder %s23, 0
      %p146 = por %p144, %p145
      %p147 = scmp.ne.s32.totalorder %s139, %s141
      %p148 = scmp.eq.s32.totalorder %s28, 1
      %p149 = por %p147, %p148
      %p150 = scmp.ne.s32.totalorder %s141, %s142
      %p151 = scmp.eq.s32.totalorder %s28, 0
      %p152 = por %p150, %p151
      %p153 = scmp.ne.s32.totalorder %s141, %s142
      %p154 = scmp.eq.s32.totalorder %s29, 1
      %p155 = por %p153, %p154
      %p157 = scmp.ne.s32.totalorder %s142, %s156
      %p158 = scmp.eq.s32.totalorder %s29, 0
      %p159 = por %p157, %p158
      %s161 = sadd.s32 %s160, 1
      %p164 = scmp.eq.s32.totalorder %s23, 1
      %p165 = scmp.ne.s32.totalorder %s160, %s162
      %p166 = scmp.eq.s32.totalorder %s23, 0
      %p167 = por %p165, %p166
      %p168 = scmp.ne.s32.totalorder %s160, %s162
      %p169 = scmp.eq.s32.totalorder %s28, 1
      %p170 = por %p168, %p169
      %p171 = scmp.ne.s32.totalorder %s162, %s163
      %p172 = scmp.eq.s32.totalorder %s28, 0
      %p173 = por %p171, %p172
      %p174 = scmp.ne.s32.totalorder %s162, %s163
      %p175 = scmp.eq.s32.totalorder %s29, 1
      %p176 = por %p174, %p175
      %p178 = scmp.ne.s32.totalorder %s163, %s177
      %p179 = scmp.eq.s32.totalorder %s29, 0
      %p180 = por %p178, %p179
      %s182 = sadd.s32 %s181, 1
      %p185 = scmp.eq.s32.totalorder %s23, 1
      %p186 = scmp.ne.s32.totalorder %s181, %s183
      %p187 = scmp.eq.s32.totalorder %s23, 0
      %p188 = por %p186, %p187
      %p189 = scmp.ne.s32.totalorder %s181, %s183
      %p190 = scmp.eq.s32.totalorder %s28, 1
      %p191 = por %p189, %p190
      %p192 = scmp.ne.s32.totalorder %s183, %s184
      %p193 = scmp.eq.s32.totalorder %s28, 0
      %p194 = por %p192, %p193
      %p195 = scmp.ne.s32.totalorder %s183, %s184
      %p196 = scmp.eq.s32.totalorder %s29, 1
      %p197 = por %p195, %p196
      %p199 = scmp.ne.s32.totalorder %s184, %s198
      %p200 = scmp.eq.s32.totalorder %s29, 0
      %p201 = por %p199, %p200
      %s202 = ssub.s32 %s30, %s42
      %s203 = ssub.s32 %s31, %s38
      %s204 = sor.u32 %s202, %s203
      %p205 = scmp.eq.s32.totalorder %s204, 0
      %s207 = sadd.s32 %s206, 1
      %s208 = scalar_select %p205, %s206, %s207
      %p211 = pneg %p205
      %p212 = scmp.eq.s32.totalorder %s23, 1
      %p213 = por %p211, %p212
      %p214 = scmp.ne.s32.totalorder %s206, %s209
      %p215 = scmp.eq.s32.totalorder %s23, 0
      %p216 = por %p214, %p215
      %p217 = scmp.ne.s32.totalorder %s206, %s209
      %p218 = scmp.eq.s32.totalorder %s28, 1
      %p219 = por %p217, %p218
      %p220 = scmp.ne.s32.totalorder %s209, %s210
      %p221 = scmp.eq.s32.totalorder %s28, 0
      %p222 = por %p220, %p221
      %p223 = scmp.ne.s32.totalorder %s209, %s210
      %p224 = scmp.eq.s32.totalorder %s29, 1
      %p225 = por %p223, %p224
      %p227 = scmp.ne.s32.totalorder %s210, %s226
      %p228 = scmp.eq.s32.totalorder %s29, 0
      %p229 = por %p227, %p228
      %p230 = scmp.le.s32.totalorder 1, %s23
      %p231 = scmp.lt.s32.totalorder %s23, 3
      %p232 = pnand %p230, %p231
      %p233 = pneg %p232
      // Predicated region
      $region9: #{tpu_custom_call.1} parent=5 // pred_check
        _
      $region10: #{tpu_custom_call.1} parent=5 // pred_check_branch
        %235 = sbr.rel (%p232) target = $region12
      $region11: #{tpu_custom_call.1} parent=5 // pred_region
        %s236 = ssub.s32 %s23, 1
        // Predicated region
        $region13: #{tpu_custom_call.1} parent=11 // pred_check
          %p237 = pneg %p110
        $region14: #{tpu_custom_call.1} parent=11 // pred_check_branch
          %239 = sbr.rel (%p237) target = $region16
        $region15: #{tpu_custom_call.1} parent=11 // pred_region
          %241 = vsyncadd [#allocation7], 0
          %s242 = sshll.u32 %s2, 4
          %s243 = int_to_ptr.hbm [resolvable:$true] %s242
          %s244 = sshll.u32 [#allocation8], 4
          %s245 = int_to_ptr.vmem [resolvable:$true] %s244
          %250 = dma.hbm_to_vmem [thread:$0]  %s243, 512, %s245, [#allocation7], 128, 128, 8
        $region16: #{tpu_custom_call.1} parent=11 // pred_fallthru
          _
        // Predicated region
        $region17: #{tpu_custom_call.1} parent=11 // pred_check
          %p251 = pneg %p131
        $region18: #{tpu_custom_call.1} parent=11 // pred_check_branch
          %253 = sbr.rel (%p251) target = $region20
        $region19: #{tpu_custom_call.1} parent=11 // pred_region
          %255 = vsyncadd [#allocation10], 0
          %s256 = sshll.u32 %s3, 4
          %s257 = int_to_ptr.hbm [resolvable:$true] %s256
          %s258 = sshll.u32 [#allocation9], 4
          %s259 = int_to_ptr.vmem [resolvable:$true] %s258
          %264 = dma.hbm_to_vmem [thread:$0]  %s257, 512, %s259, [#allocation10], 128, 128, 8
        $region20: #{tpu_custom_call.1} parent=11 // pred_fallthru
          _
        // Predicated region
        $region21: #{tpu_custom_call.1} parent=11 // pred_check
          %p265 = pneg %p152
        $region22: #{tpu_custom_call.1} parent=11 // pred_check_branch
          %267 = sbr.rel (%p265) target = $region24
        $region23: #{tpu_custom_call.1} parent=11 // pred_region
          %269 = vsyncadd [#allocation10], 0
          %s270 = sshll.u32 %s4, 4
          %s271 = int_to_ptr.hbm [resolvable:$true] %s270
          %s272 = sshll.u32 [#allocation11], 4
          %s273 = int_to_ptr.vmem [resolvable:$true] %s272
          %278 = dma.hbm_to_vmem [thread:$0]  %s271, 512, %s273, [#allocation10], 128, 128, 8
        $region24: #{tpu_custom_call.1} parent=11 // pred_fallthru
          _
        // Predicated region
        $region25: #{tpu_custom_call.1} parent=11 // pred_check
          %p279 = pneg %p173
        $region26: #{tpu_custom_call.1} parent=11 // pred_check_branch
          %281 = sbr.rel (%p279) target = $region28
        $region27: #{tpu_custom_call.1} parent=11 // pred_region
          _
        $region28: #{tpu_custom_call.1} parent=11 // pred_fallthru
          _
        // Predicated region
        $region29: #{tpu_custom_call.1} parent=11 // pred_check
          %p282 = pneg %p194
        $region30: #{tpu_custom_call.1} parent=11 // pred_check_branch
          %284 = sbr.rel (%p282) target = $region32
        $region31: #{tpu_custom_call.1} parent=11 // pred_region
          _
        $region32: #{tpu_custom_call.1} parent=11 // pred_fallthru
          _
      $region12: #{tpu_custom_call.1} parent=5 // pred_fallthru
        _
      %p285 = scmp.lt.s32.totalorder %s23, 2
      // Predicated region
      $region33: #{tpu_custom_call.1} parent=5 // pred_check
        %p286 = pneg %p285
      $region34: #{tpu_custom_call.1} parent=5 // pred_check_branch
        %288 = sbr.rel (%p286) target = $region36
      $region35: #{tpu_custom_call.1} parent=5 // pred_region
        // Predicated region
        $region37: #{tpu_custom_call.1} parent=35 // pred_check
          %p289 = pneg %p57
        $region38: #{tpu_custom_call.1} parent=35 // pred_check_branch
          %291 = sbr.rel (%p289) target = $region40
        $region39: #{tpu_custom_call.1} parent=35 // pred_region
          %s292 = sand.u32 %s47, 1
          %s293 = scalar_lea.sflag [#allocation4], %s292
          %s294 = sand.u32 %s47, 1
          %s295 = smul.addr %s294, 8
          %s296 = scalar_lea.vmem [#allocation3], %s295
          %298 = vsyncadd %s293, 0
          %s299 = sadd.s32 %s31, %s30
          %s300 = smul.addr %s299, 8
          %s301 = scalar_lea.hbm %s0, %s300
          %s303 = sshll.u32 %s301, 4
          %s304 = int_to_ptr.hbm [resolvable:$true] %s303
          %s305 = sshll.u32 %s296, 4
          %s306 = int_to_ptr.vmem [resolvable:$true] %s305
          %308 = dma.hbm_to_vmem [thread:$0]  %s304, 128, %s306, %s293
        $region40: #{tpu_custom_call.1} parent=35 // pred_fallthru
          _
        // Predicated region
        $region41: #{tpu_custom_call.1} parent=35 // pred_check
          %p309 = pneg %p83
        $region42: #{tpu_custom_call.1} parent=35 // pred_check_branch
          %311 = sbr.rel (%p309) target = $region44
        $region43: #{tpu_custom_call.1} parent=35 // pred_region
          %s312 = sand.u32 %s23, 1
          %s313 = scalar_lea.sflag [#allocation7], %s312
          %s314 = sand.u32 %s73, 1
          %s315 = smul.addr %s314, 8
          %s316 = scalar_lea.vmem [#allocation6], %s315
          %318 = vsyncadd %s313, 0
          %s319 = smul.addr %s30, 8
          %s320 = scalar_lea.hbm %s1, %s319
          %s322 = sshll.u32 %s320, 4
          %s323 = int_to_ptr.hbm [resolvable:$true] %s322
          %s324 = sshll.u32 %s316, 4
          %s325 = int_to_ptr.vmem [resolvable:$true] %s324
          %327 = dma.hbm_to_vmem [thread:$0]  %s323, 128, %s325, %s313
        $region44: #{tpu_custom_call.1} parent=35 // pred_fallthru
          _
      $region36: #{tpu_custom_call.1} parent=5 // pred_fallthru
        _
      %p328 = scmp.le.s32.totalorder 1, %s23
      %p329 = scmp.lt.s32.totalorder %s23, 3
      %p330 = pnand %p328, %p329
      %p331 = pneg %p330
      // Predicated region
      $region45: #{tpu_custom_call.1} parent=5 // pred_check
        _
      $region46: #{tpu_custom_call.1} parent=5 // pred_check_branch
        %333 = sbr.rel (%p330) target = $region48
      $region47: #{tpu_custom_call.1} parent=5 // pred_region
        %s334 = ssub.s32 %s23, 1
        %s335 = sand.u32 %s50, 1
        %s336 = scalar_lea.sflag [#allocation4], %s335
        %s337 = sand.u32 %s50, 1
        %s338 = smul.addr %s337, 8
        %s339 = scalar_lea.vmem [#allocation3], %s338
        // Predicated region
        $region49: #{tpu_custom_call.1} parent=47 // pred_check
          %p340 = pneg %p63
        $region50: #{tpu_custom_call.1} parent=47 // pred_check_branch
          %342 = sbr.rel (%p340) target = $region52
        $region51: #{tpu_custom_call.1} parent=47 // pred_region
          %344 = dma.done %s336, 128
        $region52: #{tpu_custom_call.1} parent=47 // pred_fallthru
          _
        %s345 = sand.u32 %s28, 1
        %s346 = scalar_lea.sflag [#allocation7], %s345
        %s347 = sand.u32 %s76, 1
        %s348 = smul.addr %s347, 8
        %s349 = scalar_lea.vmem [#allocation6], %s348
        // Predicated region
        $region53: #{tpu_custom_call.1} parent=47 // pred_check
          %p350 = pneg %p89
        $region54: #{tpu_custom_call.1} parent=47 // pred_check_branch
          %352 = sbr.rel (%p350) target = $region56
        $region55: #{tpu_custom_call.1} parent=47 // pred_region
          %354 = dma.done %s346, 128
        $region56: #{tpu_custom_call.1} parent=47 // pred_fallthru
          _
        // Predicated region
        $region57: #{tpu_custom_call.1} parent=47 // pred_check
          %p355 = pneg %p110
        $region58: #{tpu_custom_call.1} parent=47 // pred_check_branch
          %357 = sbr.rel (%p355) target = $region60
        $region59: #{tpu_custom_call.1} parent=47 // pred_region
          %359 = dma.done [#allocation7], 512
        $region60: #{tpu_custom_call.1} parent=47 // pred_fallthru
          _
        // Predicated region
        $region61: #{tpu_custom_call.1} parent=47 // pred_check
          %p360 = pneg %p131
        $region62: #{tpu_custom_call.1} parent=47 // pred_check_branch
          %362 = sbr.rel (%p360) target = $region64
        $region63: #{tpu_custom_call.1} parent=47 // pred_region
          %364 = dma.done [#allocation10], 512
        $region64: #{tpu_custom_call.1} parent=47 // pred_fallthru
          _
        // Predicated region
        $region65: #{tpu_custom_call.1} parent=47 // pred_check
          %p365 = pneg %p152
        $region66: #{tpu_custom_call.1} parent=47 // pred_check_branch
          %367 = sbr.rel (%p365) target = $region68
        $region67: #{tpu_custom_call.1} parent=47 // pred_region
          %369 = dma.done [#allocation10], 512
        $region68: #{tpu_custom_call.1} parent=47 // pred_fallthru
          _
        %s370 = sand.u32 %s50, 1
        %s371 = scalar_lea.sflag [#allocation4], %s370
        %s372 = sand.u32 %s50, 1
        %s373 = smul.addr %s372, 8
        %s374 = scalar_lea.vmem [#allocation3], %s373
        %p375 = pneg %p63
        %p376 = pneg %p60
        %s377 = sand.u32 %s28, 1
        %s378 = scalar_lea.sflag [#allocation7], %s377
        %s379 = sand.u32 %s76, 1
        %s380 = smul.addr %s379, 8
        %s381 = scalar_lea.vmem [#allocation6], %s380
        %p382 = pneg %p89
        %p383 = pneg %p86
        %p384 = pneg %p110
        %p385 = pneg %p107
        %p386 = pneg %p131
        %p387 = pneg %p128
        %p388 = pneg %p152
        %p389 = pneg %p149
        %p390 = pneg %p173
        %p391 = pneg %p170
        %p392 = pneg %p194
        %p393 = pneg %p191
        %p394 = pneg %p222
        %p395 = pneg %p219
        %s396 = sand.u32 %s209, 1
        %s397 = scalar_lea.sflag [#allocation5], %s396
        %s398 = sand.u32 %s209, 1
        %s399 = smul.addr %s398, 8
        %s400 = scalar_lea.vmem [#allocation12], %s399
        %v401 = vld [vmem:[%s5] sm:$0x1]
        %v402 = vld [vmem:[%s6] sm:$0x1]
        %p403 = scmp.eq.s32.totalorder %s33, 0
        // Predicated region
        $region69: #{tpu_custom_call.1} parent=47 // pred_check
          %p404 = pneg %p403
        $region70: #{tpu_custom_call.1} parent=47 // pred_check_branch
          %406 = sbr.rel (%p404) target = $region72
        $region71: #{tpu_custom_call.1} parent=47 // pred_region
          %v407 = vld [vmem:[%s349] sm:$0xff]
          %v408 = vld [vmem:[#allocation9] sm:$0xff]
          %v409 = vld [vmem:[#allocation9 + $0x8] sm:$0xff]
          %v410 = vld [vmem:[#allocation9 + $0x10] sm:$0xff]
          %v411 = vld [vmem:[#allocation9 + $0x18] sm:$0xff]
          %vm412 = vcmask 261120
          %v414 = vsel %vm412, %v407, 0
          %416 = vmatpush.msra.mxu0 0.0
          %417 = vmatpush.msra.mxu0 0.0
          %418 = vmatpush.msra.mxu0 0.0
          %419 = vmatpush.msra.mxu0 0.0
          %420 = vmatpush.msra.mxu0 0.0
          %421 = vmatpush.msra.mxu0 0.0
          %422 = vmatpush.msra.mxu0 0.0
          %423 = vmatpush.msra.mxu0 0.0
          %424 = vmatpush.msra.mxu0 0.0
          %425 = vmatpush.msra.mxu0 0.0
          %426 = vmatpush.msra.mxu0 0.0
          %427 = vmatpush.msra.mxu0 0.0
          %428 = vmatpush.msra.mxu0 %v411
          %429 = vmatpush.msra.mxu0 %v410
          %430 = vmatpush.msra.mxu0 %v409
          %431 = vmatpush.msra.mxu0 %v408
          %432 = vmatmul.f32.gmra.mxu0 %v414
          %v433 = vpop.f32.mrf.mxu0
          %v434 = vadd.f32 0.0, %v433
          %435 = vdwg.mxu0
          %vm436 = vcmask 523264
          %437 = vst.msk [vmem:[#allocation2] sm:$0xff] %vm436, %v434
        $region72: #{tpu_custom_call.1} parent=47 // pred_fallthru
          _
        %v438 = vld [vmem:[%s339] sm:$0xff]
        %v439 = vld [vmem:[#allocation8] sm:$0xff]
        %v440 = vld [vmem:[#allocation8 + $0x8] sm:$0xff]
        %v441 = vld [vmem:[#allocation8 + $0x10] sm:$0xff]
        %v442 = vld [vmem:[#allocation8 + $0x18] sm:$0xff]
        %vm443 = vcmask 261120
        %v445 = vsel %vm443, %v438, 0
        %447 = vmatpush.msra.mxu0 0.0
        %448 = vmatpush.msra.mxu0 0.0
        %449 = vmatpush.msra.mxu0 0.0
        %450 = vmatpush.msra.mxu0 0.0
        %451 = vmatpush.msra.mxu0 0.0
        %452 = vmatpush.msra.mxu0 0.0
        %453 = vmatpush.msra.mxu0 0.0
        %454 = vmatpush.msra.mxu0 0.0
        %455 = vmatpush.msra.mxu0 0.0
        %456 = vmatpush.msra.mxu0 0.0
        %457 = vmatpush.msra.mxu0 0.0
        %458 = vmatpush.msra.mxu0 0.0
        %459 = vmatpush.msra.mxu0 %v442
        %460 = vmatpush.msra.mxu0 %v441
        %461 = vmatpush.msra.mxu0 %v440
        %462 = vmatpush.msra.mxu0 %v439
        %463 = vmatmul.f32.gmra.mxu0 %v445
        %v464 = vpop.f32.mrf.mxu0
        %v465 = vadd.f32 0.0, %v464
        %466 = vdwg.mxu0
        %v467 = vld [vmem:[#allocation2] sm:$0xff]
        %469 = vrot.lane.b32.xlu0 %v465, 120
        %v470 = vpop.permute.xlu0 %469
        %471 = vrot.lane.b32.xlu0 %v465, 112
        %v472 = vpop.permute.xlu0 %471
        %473 = vrot.lane.b32.xlu0 %v465, 104
        %v474 = vpop.permute.xlu0 %473
        %476 = vrot.lane.b32.xlu0 %v467, 120
        %v477 = vpop.permute.xlu0 %476
        %478 = vrot.lane.b32.xlu0 %v467, 112
        %v479 = vpop.permute.xlu0 %478
        %480 = vrot.lane.b32.xlu0 %v467, 104
        %v481 = vpop.permute.xlu0 %480
        %vm482 = vcmask 64512
        %v483 = vsel %vm482, %v465, 0
        %v485 = vsel %vm482, %v467, 0
        %487 = vmatpush.xpose.msra.mxu0 0.0
        %488 = vmatpush.xpose.msra.mxu0 0.0
        %489 = vmatpush.xpose.msra.mxu0 0.0
        %490 = vmatpush.xpose.msra.mxu0 0.0
        %491 = vmatpush.xpose.msra.mxu0 0.0
        %492 = vmatpush.xpose.msra.mxu0 0.0
        %493 = vmatpush.xpose.msra.mxu0 0.0
        %494 = vmatpush.xpose.msra.mxu0 0.0
        %495 = vmatpush.xpose.msra.mxu0 0.0
        %496 = vmatpush.xpose.msra.mxu0 0.0
        %497 = vmatpush.xpose.msra.mxu0 0.0
        %498 = vmatpush.xpose.msra.mxu0 0.0
        %499 = vmatpush.xpose.msra.mxu0 0.0
        %500 = vmatpush.xpose.msra.mxu0 0.0
        %501 = vmatpush.xpose.msra.mxu0 0.0
        %502 = vmatpush.xpose.msra.mxu0 %v485
        %503 = vmatmul.f32.gmra.mxu0 %v483
        %v504 = vpop.f32.mrf.mxu0
        %v505 = vadd.f32 0.0, %v504
        %506 = vdwg.mxu0
        %v507 = vsel %vm482, %v470, 0
        %v509 = vsel %vm482, %v477, 0
        %511 = vmatpush.xpose.msra.mxu0 0.0
        %512 = vmatpush.xpose.msra.mxu0 0.0
        %513 = vmatpush.xpose.msra.mxu0 0.0
        %514 = vmatpush.xpose.msra.mxu0 0.0
        %515 = vmatpush.xpose.msra.mxu0 0.0
        %516 = vmatpush.xpose.msra.mxu0 0.0
        %517 = vmatpush.xpose.msra.mxu0 0.0
        %518 = vmatpush.xpose.msra.mxu0 0.0
        %519 = vmatpush.xpose.msra.mxu0 0.0
        %520 = vmatpush.xpose.msra.mxu0 0.0
        %521 = vmatpush.xpose.msra.mxu0 0.0
        %522 = vmatpush.xpose.msra.mxu0 0.0
        %523 = vmatpush.xpose.msra.mxu0 0.0
        %524 = vmatpush.xpose.msra.mxu0 0.0
        %525 = vmatpush.xpose.msra.mxu0 0.0
        %526 = vmatpush.xpose.msra.mxu0 %v509
        %527 = vmatmul.f32.gmra.mxu0 %v507
        %v528 = vpop.f32.mrf.mxu0
        %v529 = vadd.f32 0.0, %v528
        %530 = vdwg.mxu0
        %v531 = vsel %vm482, %v472, 0
        %v533 = vsel %vm482, %v479, 0
        %535 = vmatpush.xpose.msra.mxu0 0.0
        %536 = vmatpush.xpose.msra.mxu0 0.0
        %537 = vmatpush.xpose.msra.mxu0 0.0
        %538 = vmatpush.xpose.msra.mxu0 0.0
        %539 = vmatpush.xpose.msra.mxu0 0.0
        %540 = vmatpush.xpose.msra.mxu0 0.0
        %541 = vmatpush.xpose.msra.mxu0 0.0
        %542 = vmatpush.xpose.msra.mxu0 0.0
        %543 = vmatpush.xpose.msra.mxu0 0.0
        %544 = vmatpush.xpose.msra.mxu0 0.0
        %545 = vmatpush.xpose.msra.mxu0 0.0
        %546 = vmatpush.xpose.msra.mxu0 0.0
        %547 = vmatpush.xpose.msra.mxu0 0.0
        %548 = vmatpush.xpose.msra.mxu0 0.0
        %549 = vmatpush.xpose.msra.mxu0 0.0
        %550 = vmatpush.xpose.msra.mxu0 %v533
        %551 = vmatmul.f32.gmra.mxu0 %v531
        %v552 = vpop.f32.mrf.mxu0
        %v553 = vadd.f32 0.0, %v552
        %554 = vdwg.mxu0
        %v555 = vsel %vm482, %v474, 0
        %v557 = vsel %vm482, %v481, 0
        %559 = vmatpush.xpose.msra.mxu0 0.0
        %560 = vmatpush.xpose.msra.mxu0 0.0
        %561 = vmatpush.xpose.msra.mxu0 0.0
        %562 = vmatpush.xpose.msra.mxu0 0.0
        %563 = vmatpush.xpose.msra.mxu0 0.0
        %564 = vmatpush.xpose.msra.mxu0 0.0
        %565 = vmatpush.xpose.msra.mxu0 0.0
        %566 = vmatpush.xpose.msra.mxu0 0.0
        %567 = vmatpush.xpose.msra.mxu0 0.0
        %568 = vmatpush.xpose.msra.mxu0 0.0
        %569 = vmatpush.xpose.msra.mxu0 0.0
        %570 = vmatpush.xpose.msra.mxu0 0.0
        %571 = vmatpush.xpose.msra.mxu0 0.0
        %572 = vmatpush.xpose.msra.mxu0 0.0
        %573 = vmatpush.xpose.msra.mxu0 0.0
        %574 = vmatpush.xpose.msra.mxu0 %v557
        %575 = vmatmul.f32.gmra.mxu0 %v555
        %v576 = vpop.f32.mrf.mxu0
        %v577 = vadd.f32 0.0, %v576
        %578 = vdwg.mxu0
        %v579 = vsel %vm482, %v505, -inf
        %580 = vmax.xlane.f32.xlu0 %v579
        %v581 = vpop.xlane.xlu0 %580
        %v582 = vsel %vm482, %v529, -inf
        %583 = vmax.xlane.f32.xlu0 %v582
        %v584 = vpop.xlane.xlu0 %583
        %v585 = vsel %vm482, %v553, -inf
        %586 = vmax.xlane.f32.xlu0 %v585
        %v587 = vpop.xlane.xlu0 %586
        %v588 = vsel %vm482, %v577, -inf
        %589 = vmax.xlane.f32.xlu0 %v588
        %v590 = vpop.xlane.xlu0 %589
        %v591 = vsub.f32 %v505, %v581
        %v592 = vsub.f32 %v529, %v584
        %v593 = vsub.f32 %v553, %v587
        %v594 = vsub.f32 %v577, %v590
        %v595 = vmul.f32 %v591, 1.442695
        %v596 = vpow.pop %v595
        %v597 = vmul.f32 %v592, 1.442695
        %v598 = vpow.pop %v597
        %v599 = vmul.f32 %v593, 1.442695
        %v600 = vpow.pop %v599
        %v601 = vmul.f32 %v594, 1.442695
        %v602 = vpow.pop %v601
        %v603 = vsel %vm482, %v596, 0.0
        %604 = vadd.xlane.f32.xlu0 %v603
        %v605 = vpop.xlane.xlu0 %604
        %v606 = vsel %vm482, %v598, 0.0
        %607 = vadd.xlane.f32.xlu0 %v606
        %v608 = vpop.xlane.xlu0 %607
        %v609 = vsel %vm482, %v600, 0.0
        %610 = vadd.xlane.f32.xlu0 %v609
        %v611 = vpop.xlane.xlu0 %610
        %v612 = vsel %vm482, %v602, 0.0
        %613 = vadd.xlane.f32.xlu0 %v612
        %v614 = vpop.xlane.xlu0 %613
        %615 = vrot.lane.b32.xlu0 %v467, 96
        %v616 = vpop.permute.xlu0 %615
        %v619 = vsel %vm482, %v596, 0
        %621 = vmatpush.msra.mxu0 0.0
        %622 = vmatpush.msra.mxu0 0.0
        %623 = vmatpush.msra.mxu0 0.0
        %624 = vmatpush.msra.mxu0 0.0
        %625 = vmatpush.msra.mxu0 0.0
        %626 = vmatpush.msra.mxu0 0.0
        %627 = vmatpush.msra.mxu0 0.0
        %628 = vmatpush.msra.mxu0 0.0
        %629 = vmatpush.msra.mxu0 0.0
        %630 = vmatpush.msra.mxu0 0.0
        %631 = vmatpush.msra.mxu0 0.0
        %632 = vmatpush.msra.mxu0 0.0
        %633 = vmatpush.msra.mxu0 0.0
        %634 = vmatpush.msra.mxu0 0.0
        %635 = vmatpush.msra.mxu0 0.0
        %636 = vmatpush.msra.mxu0 %v616
        %637 = vmatmul.f32.gmra.mxu0 %v619
        %v638 = vpop.f32.mrf.mxu0
        %v639 = vadd.f32 0.0, %v638
        %640 = vdwg.mxu0
        %641 = vrot.lane.b32.xlu0 %v477, 96
        %v642 = vpop.permute.xlu0 %641
        %v645 = vsel %vm482, %v598, 0
        %647 = vmatpush.msra.mxu0 0.0
        %648 = vmatpush.msra.mxu0 0.0
        %649 = vmatpush.msra.mxu0 0.0
        %650 = vmatpush.msra.mxu0 0.0
        %651 = vmatpush.msra.mxu0 0.0
        %652 = vmatpush.msra.mxu0 0.0
        %653 = vmatpush.msra.mxu0 0.0
        %654 = vmatpush.msra.mxu0 0.0
        %655 = vmatpush.msra.mxu0 0.0
        %656 = vmatpush.msra.mxu0 0.0
        %657 = vmatpush.msra.mxu0 0.0
        %658 = vmatpush.msra.mxu0 0.0
        %659 = vmatpush.msra.mxu0 0.0
        %660 = vmatpush.msra.mxu0 0.0
        %661 = vmatpush.msra.mxu0 0.0
        %662 = vmatpush.msra.mxu0 %v642
        %663 = vmatmul.f32.gmra.mxu0 %v645
        %v664 = vpop.f32.mrf.mxu0
        %v665 = vadd.f32 0.0, %v664
        %666 = vdwg.mxu0
        %667 = vrot.lane.b32.xlu0 %v479, 96
        %v668 = vpop.permute.xlu0 %667
        %v671 = vsel %vm482, %v600, 0
        %673 = vmatpush.msra.mxu0 0.0
        %674 = vmatpush.msra.mxu0 0.0
        %675 = vmatpush.msra.mxu0 0.0
        %676 = vmatpush.msra.mxu0 0.0
        %677 = vmatpush.msra.mxu0 0.0
        %678 = vmatpush.msra.mxu0 0.0
        %679 = vmatpush.msra.mxu0 0.0
        %680 = vmatpush.msra.mxu0 0.0
        %681 = vmatpush.msra.mxu0 0.0
        %682 = vmatpush.msra.mxu0 0.0
        %683 = vmatpush.msra.mxu0 0.0
        %684 = vmatpush.msra.mxu0 0.0
        %685 = vmatpush.msra.mxu0 0.0
        %686 = vmatpush.msra.mxu0 0.0
        %687 = vmatpush.msra.mxu0 0.0
        %688 = vmatpush.msra.mxu0 %v668
        %689 = vmatmul.f32.gmra.mxu0 %v671
        %v690 = vpop.f32.mrf.mxu0
        %v691 = vadd.f32 0.0, %v690
        %692 = vdwg.mxu0
        %693 = vrot.lane.b32.xlu0 %v481, 96
        %v694 = vpop.permute.xlu0 %693
        %v697 = vsel %vm482, %v602, 0
        %699 = vmatpush.msra.mxu0 0.0
        %700 = vmatpush.msra.mxu0 0.0
        %701 = vmatpush.msra.mxu0 0.0
        %702 = vmatpush.msra.mxu0 0.0
        %703 = vmatpush.msra.mxu0 0.0
        %704 = vmatpush.msra.mxu0 0.0
        %705 = vmatpush.msra.mxu0 0.0
        %706 = vmatpush.msra.mxu0 0.0
        %707 = vmatpush.msra.mxu0 0.0
        %708 = vmatpush.msra.mxu0 0.0
        %709 = vmatpush.msra.mxu0 0.0
        %710 = vmatpush.msra.mxu0 0.0
        %711 = vmatpush.msra.mxu0 0.0
        %712 = vmatpush.msra.mxu0 0.0
        %713 = vmatpush.msra.mxu0 0.0
        %714 = vmatpush.msra.mxu0 %v694
        %715 = vmatmul.f32.gmra.mxu0 %v697
        %v716 = vpop.f32.mrf.mxu0
        %v717 = vadd.f32 0.0, %v716
        %718 = vdwg.mxu0
        %v719 = vrcp.pop %v605
        %v720 = vmul.f32 %v605, %v719
        %v721 = vsub.f32 1.0, %v720
        %v722 = vmul.f32 %v719, %v721
        %v723 = vadd.f32 %v719, %v722
        %vm724 = vweird.f32 %v605
        %vm725 = vweird.f32 %v719
        %vm726 = vmor %vm724, %vm725
        %v727 = vsel %vm726, %v719, %v723
        %v728 = vand.u32 2147483647, %v605
        %vm729 = vcmp.eq.f32.partialorder %v728, 8.507059e+37
        %v730 = vand.u32 %v605, 2147483648
        %v731 = vor.u32 1.1754944e-38, %v730
        %v732 = vsel %vm729, %v731, %v727
        %v733 = vrcp.pop %v608
        %v734 = vmul.f32 %v608, %v733
        %v735 = vsub.f32 1.0, %v734
        %v736 = vmul.f32 %v733, %v735
        %v737 = vadd.f32 %v733, %v736
        %vm738 = vweird.f32 %v608
        %vm739 = vweird.f32 %v733
        %vm740 = vmor %vm738, %vm739
        %v741 = vsel %vm740, %v733, %v737
        %v742 = vand.u32 2147483647, %v608
        %vm743 = vcmp.eq.f32.partialorder %v742, 8.507059e+37
        %v744 = vand.u32 %v608, 2147483648
        %v745 = vor.u32 1.1754944e-38, %v744
        %v746 = vsel %vm743, %v745, %v741
        %v747 = vrcp.pop %v611
        %v748 = vmul.f32 %v611, %v747
        %v749 = vsub.f32 1.0, %v748
        %v750 = vmul.f32 %v747, %v749
        %v751 = vadd.f32 %v747, %v750
        %vm752 = vweird.f32 %v611
        %vm753 = vweird.f32 %v747
        %vm754 = vmor %vm752, %vm753
        %v755 = vsel %vm754, %v747, %v751
        %v756 = vand.u32 2147483647, %v611
        %vm757 = vcmp.eq.f32.partialorder %v756, 8.507059e+37
        %v758 = vand.u32 %v611, 2147483648
        %v759 = vor.u32 1.1754944e-38, %v758
        %v760 = vsel %vm757, %v759, %v755
        %v761 = vrcp.pop %v614
        %v762 = vmul.f32 %v614, %v761
        %v763 = vsub.f32 1.0, %v762
        %v764 = vmul.f32 %v761, %v763
        %v765 = vadd.f32 %v761, %v764
        %vm766 = vweird.f32 %v614
        %vm767 = vweird.f32 %v761
        %vm768 = vmor %vm766, %vm767
        %v769 = vsel %vm768, %v761, %v765
        %v770 = vand.u32 2147483647, %v614
        %vm771 = vcmp.eq.f32.partialorder %v770, 8.507059e+37
        %v772 = vand.u32 %v614, 2147483648
        %v773 = vor.u32 1.1754944e-38, %v772
        %v774 = vsel %vm771, %v773, %v769
        %v775 = vmul.f32 %v639, %v732
        %v776 = vmul.f32 %v665, %v746
        %v777 = vmul.f32 %v691, %v760
        %v778 = vmul.f32 %v717, %v774
        %780 = vrot.lane.b32.xlu0 %v776, 8
        %v781 = vpop.permute.xlu0 %780
        %784 = vrot.lane.b32.xlu0 %v777, 16
        %v785 = vpop.permute.xlu0 %784
        %788 = vrot.lane.b32.xlu0 %v778, 24
        %v789 = vpop.permute.xlu0 %788
        %v791 = vsel %vm482, %v775, %v781
        %vm792 = vcmask 130048
        %v793 = vsel %vm792, %v791, %v785
        %vm794 = vcmask 195584
        %v795 = vsel %vm794, %v793, %v789
        %v796 = vld [vmem:[#allocation11] sm:$0xff]
        %v797 = vld [vmem:[#allocation11 + $0x8] sm:$0xff]
        %v798 = vld [vmem:[#allocation11 + $0x10] sm:$0xff]
        %v799 = vld [vmem:[#allocation11 + $0x18] sm:$0xff]
        %v801 = vsel %vm443, %v795, 0
        %803 = vmatpush.msra.mxu0 0.0
        %804 = vmatpush.msra.mxu0 0.0
        %805 = vmatpush.msra.mxu0 0.0
        %806 = vmatpush.msra.mxu0 0.0
        %807 = vmatpush.msra.mxu0 0.0
        %808 = vmatpush.msra.mxu0 0.0
        %809 = vmatpush.msra.mxu0 0.0
        %810 = vmatpush.msra.mxu0 0.0
        %811 = vmatpush.msra.mxu0 0.0
        %812 = vmatpush.msra.mxu0 0.0
        %813 = vmatpush.msra.mxu0 0.0
        %814 = vmatpush.msra.mxu0 0.0
        %815 = vmatpush.msra.mxu0 %v799
        %816 = vmatpush.msra.mxu0 %v798
        %817 = vmatpush.msra.mxu0 %v797
        %818 = vmatpush.msra.mxu0 %v796
        %819 = vmatmul.f32.gmra.mxu0 %v801
        %v820 = vpop.f32.mrf.mxu0
        %v821 = vadd.f32 0.0, %v820
        %822 = vdwg.mxu0
        %v823 = vadd.f32 %v438, %v821
        %v824 = vsel %vm443, %v823, 0.0
        %825 = vadd.xlane.f32.xlu0 %v824
        %v826 = vpop.xlane.xlu0 %825
        %v827 = vrcp.pop 32.0
        %v828 = vmul.f32 32.0, %v827
        %v829 = vsub.f32 1.0, %v828
        %v830 = vmul.f32 %v827, %v829
        %v831 = vadd.f32 %v827, %v830
        %vm832 = vweird.f32 %v827
        %v833 = vsel %vm832, %v827, %v831
        %v834 = vmul.f32 %v826, %v833
        %v835 = vmul.f32 %v823, %v823
        %v836 = vsel %vm443, %v835, 0.0
        %837 = vadd.xlane.f32.xlu0 %v836
        %v838 = vpop.xlane.xlu0 %837
        %v839 = vmul.f32 %v838, %v833
        %v840 = vmul.f32 %v834, %v834
        %v841 = vsub.f32 %v839, %v840
        %v842 = vsub.f32 %v823, %v834
        %v843 = vadd.f32 %v841, 1e-05
        %v844 = vrsqrt.pop %v843
        %v845 = vmul.f32 %v844, %v843
        %v846 = vmul.f32 %v845, %v844
        %v847 = vmul.f32 0.5, %v846
        %v848 = vsub.f32 1.5, %v847
        %v849 = vmul.f32 %v844, %v848
        %vm850 = vweird.f32 %v843
        %vm851 = vweird.f32 %v844
        %vm852 = vmor %vm850, %vm851
        %v853 = vsel %vm852, %v844, %v849
        %v854 = vmul.f32 %v842, %v853
        %v856 = vperm.slane %v401, 0
        %v858 = vmul.f32 %v854, %v856
        %v860 = vperm.slane %v402, 0
        %v862 = vadd.f32 %v858, %v860
        %863 = vst.msk [vmem:[%s400] sm:$0xff] %vm443, %v862
        %s864 = sand.u32 %s209, 1
        %s865 = scalar_lea.sflag [#allocation5], %s864
        %s866 = sand.u32 %s209, 1
        %s867 = smul.addr %s866, 8
        %s868 = scalar_lea.vmem [#allocation12], %s867
        // Predicated region
        $region73: #{tpu_custom_call.1} parent=47 // pred_check
          %p869 = pneg %p219
        $region74: #{tpu_custom_call.1} parent=47 // pred_check_branch
          %871 = sbr.rel (%p869) target = $region76
        $region75: #{tpu_custom_call.1} parent=47 // pred_region
          %873 = vsyncadd %s865, 0
          %s874 = sadd.s32 %s33, %s32
          %s875 = smul.addr %s874, 8
          %s876 = scalar_lea.hbm %s7, %s875
          %s878 = sshll.u32 %s868, 4
          %s879 = int_to_ptr.vmem [resolvable:$true] %s878
          %s880 = sshll.u32 %s876, 4
          %s881 = int_to_ptr.hbm [resolvable:$true] %s880
          %883 = dma.vmem_to_hbm [thread:$0]  %s879, 128, %s881, %s865
        $region76: #{tpu_custom_call.1} parent=47 // pred_fallthru
          _
      $region48: #{tpu_custom_call.1} parent=5 // pred_fallthru
        _
      %p884 = scmp.le.s32.totalorder 2, %s23
      // Predicated region
      $region77: #{tpu_custom_call.1} parent=5 // pred_check
        %p885 = pneg %p884
      $region78: #{tpu_custom_call.1} parent=5 // pred_check_branch
        %887 = sbr.rel (%p885) target = $region80
      $region79: #{tpu_custom_call.1} parent=5 // pred_region
        %s888 = ssub.s32 %s23, 2
        // Predicated region
        $region81: #{tpu_custom_call.1} parent=79 // pred_check
          %p889 = pneg %p225
        $region82: #{tpu_custom_call.1} parent=79 // pred_check_branch
          %891 = sbr.rel (%p889) target = $region84
        $region83: #{tpu_custom_call.1} parent=79 // pred_region
          %s892 = sand.u32 %s210, 1
          %s893 = scalar_lea.sflag [#allocation5], %s892
          %s894 = sand.u32 %s210, 1
          %s895 = smul.addr %s894, 8
          %s896 = scalar_lea.vmem [#allocation12], %s895
          %898 = dma.done %s893, 128
        $region84: #{tpu_custom_call.1} parent=79 // pred_fallthru
          _
      $region80: #{tpu_custom_call.1} parent=5 // pred_fallthru
        _
    $region6: #{tpu_custom_call.1} parent=1 // loop_footer
      %s27 = sadd.s32 1, %s23
    $region7: #{tpu_custom_call.1} parent=1 // loop_footer_branch
      %22 = sbr.rel target = $region3
    $region8: #{tpu_custom_call.1} parent=1 // loop_exit
      _
    %899 = vsyncpa [#allocation4], 1
    %s900 = scalar_lea.sflag [#allocation4], 1
    %901 = vsyncpa %s900, 1
    %902 = vsyncpa [#allocation7], 1
    %s903 = scalar_lea.sflag [#allocation7], 1
    %904 = vsyncpa %s903, 1
    %905 = vsyncpa [#allocation10], 1
    %906 = vsyncpa [#allocation5], 1
    %s907 = scalar_lea.sflag [#allocation5], 1
    %908 = vsyncpa %s907, 1

</llo_original>
